<compile_context>
chip_gen: v7x
topology: tpu7x:2x2x1
jax: 0.10.0
libtpu: 0.0.40
codegen_flags: <defaults>
</compile_context>

<pallas_src>
import functools

import jax
import jax.numpy as jnp
from jax import lax
from jax.experimental import pallas as pl
from jax.experimental.pallas import tpu as pltpu


def _round_up(x, m):
    return ((x + m - 1) // m) * m


def _choose_tile_b(batch, cap=1024):
    """Adaptive batch tile size (static, derived from the batch dimension)."""
    if batch <= 256:
        # One tile covering the whole batch: block shape == full array dims, so no
        # padded rows, no wasted MXU/DMA work, no masked stores.
        return batch
    # Multi-tile path: lane-aligned (multiple of 128) tiles, capped to amortize the
    # ~0.35us/step pipeline overhead, and split into >= 2 tiles so the "parallel"
    # grid axis gives v7x's second TensorCore work.
    tile = min(cap, _round_up(batch, 128))
    tile = min(tile, _round_up(pl.cdiv(batch, 2), 128))
    return max(tile, 128)


def _predictor_kernel(x_ref, w1_ref, w2_ref, w3_ref, pk_ref, o_ref):
    """Fused 4-layer MLP on one batch tile: 3x (matmul+bias+ReLU) -> final reduce.

    pk_ref packs [b1; b2; b3; w4] as a (4, hidden) f32 block (constant-index,
    VMEM-resident). Bias add / ReLU / accumulation are f32; only the dot operands
    of the three hidden-layer matmuls use the (possibly bf16) weight dtype.
    """
    wdt = w1_ref.dtype
    b1 = pk_ref[0:1, :]
    b2 = pk_ref[1:2, :]
    b3 = pk_ref[2:3, :]
    w4 = pk_ref[3:4, :]

    x = x_ref[...].astype(wdt)                                           # [T, n_dim]

    h = jnp.dot(x, w1_ref[...], preferred_element_type=jnp.float32) + b1
    h = jnp.maximum(h, 0.0)

    h = jnp.dot(h.astype(wdt), w2_ref[...], preferred_element_type=jnp.float32) + b2
    h = jnp.maximum(h, 0.0)

    h = jnp.dot(h.astype(wdt), w3_ref[...], preferred_element_type=jnp.float32) + b3
    h = jnp.maximum(h, 0.0)                                              # [T, hidden] f32

    # Final Linear(hidden -> 1, bias=False): contract the hidden axis of both
    # operands so the result comes out lane-dense as [1, T] directly (f32).
    y = lax.dot_general(w4, h, (((1,), (1,)), ((), ())),
                        preferred_element_type=jnp.float32)              # [1, T]
    o_ref[...] = y


@functools.partial(jax.jit, static_argnames=("tile_b", "use_bf16_matmul"))
def predictor_forward(x, w1, b1, w2, b2, w3, b3, w4, base_value, *,
                      tile_b=None, use_bf16_matmul=False):
    """x: [B, n_dim] f32; returns [B] f32 (matches torch .squeeze() + base_value).

    Note: torch's .squeeze() returns a 0-d scalar for B == 1; this returns shape [1].
    """
    B, n_dim = x.shape
    hidden = w1.shape[1]

    if tile_b is None:
        tile_b = _choose_tile_b(B)
    num_tiles = pl.cdiv(B, tile_b)
    b_out = num_tiles * tile_b   # output padded to whole tiles (tiny; sliced below)

    if use_bf16_matmul:
        # bf16 MXU operands on v6e/v7x (v5e MXU also accepts bf16); elementwise
        # math and the packed biases / final projection stay f32.
        w1 = w1.astype(jnp.bfloat16)
        w2 = w2.astype(jnp.bfloat16)
        w3 = w3.astype(jnp.bfloat16)

    # Pack the three biases and the final-layer row into one constant operand.
    packed = jnp.concatenate([b1, b2, b3, w4], axis=0).astype(jnp.float32)  # (4, H)

    out_row = pl.pallas_call(
        _predictor_kernel,
        out_shape=jax.ShapeDtypeStruct((1, b_out), jnp.float32),
        grid=(num_tiles,),
        in_specs=[
            # Streamed per batch tile (auto double-buffered). No wrapper-side pad:
            # the last block may be ragged; overhang rows only affect output lanes
            # >= B, which are sliced off below.
            pl.BlockSpec((tile_b, n_dim), lambda i: (i, 0)),
            # Weights / packed biases: constant index_map -> VMEM-resident.
            pl.BlockSpec((n_dim, hidden), lambda i: (0, 0)),
            pl.BlockSpec((hidden, hidden), lambda i: (0, 0)),
            pl.BlockSpec((hidden, hidden), lambda i: (0, 0)),
            pl.BlockSpec((4, hidden), lambda i: (0, 0)),
        ],
        # Lane-dense output: each step writes a (1, tile_b) row slab.
        out_specs=pl.BlockSpec((1, tile_b), lambda i: (0, i)),
        compiler_params=pltpu.CompilerParams(
            dimension_semantics=("parallel",),   # batch tiles across TCs (v7x)
        ),
    )(x, w1, w2, w3, packed)

    # torch: self.layers(x).squeeze() + self.base_value  -> shape [B]
    return out_row[0, :B] + base_value


def init_params(key, n_dim, hidden_size):
    """Deterministic synthetic init. Weights stored as [in, out] (transposed vs torch)."""
    ks = jax.random.split(key, 7)
    scale = 0.05
    w1 = scale * jax.random.normal(ks[0], (n_dim, hidden_size), jnp.float32)
    b1 = scale * jax.random.normal(ks[1], (1, hidden_size), jnp.float32)
    w2 = scale * jax.random.normal(ks[2], (hidden_size, hidden_size), jnp.float32)
    b2 = scale * jax.random.normal(ks[3], (1, hidden_size), jnp.float32)
    w3 = scale * jax.random.normal(ks[4], (hidden_size, hidden_size), jnp.float32)
    b3 = scale * jax.random.normal(ks[5], (1, hidden_size), jnp.float32)
    # Final Linear(hidden, 1, bias=False): torch weight shape is (1, hidden) already.
    w4 = scale * jax.random.normal(ks[6], (1, hidden_size), jnp.float32)
    base_value = jnp.zeros((1,), jnp.float32)  # nn.Parameter(torch.zeros(1)), frozen
    return w1, b1, w2, b2, w3, b3, w4, base_value


def reference_forward(x, w1, b1, w2, b2, w3, b3, w4, base_value):
    h = jnp.maximum(x @ w1 + b1, 0.0)
    h = jnp.maximum(h @ w2 + b2, 0.0)
    h = jnp.maximum(h @ w3 + b3, 0.0)
    y = jnp.sum(h * w4, axis=-1)            # == (h @ w4.T).squeeze(-1)
    return y + base_value


if __name__ == "__main__":
    key = jax.random.PRNGKey(0)
    k_x, k_p, k_x2 = jax.random.split(key, 3)

    # Case 1: small batch (single tile == full batch, no padding anywhere).
    # Module-consistent small shapes: batch=8 archs, arch_encoder.n_dim=32, hidden=128.
    B, N_DIM, HIDDEN = 8, 32, 128
    x = jax.random.normal(k_x, (B, N_DIM), jnp.float32)
    params = init_params(k_p, N_DIM, HIDDEN)
    out = jax.block_until_ready(predictor_forward(x, *params))
    ref = reference_forward(x, *params)
    assert out.shape == (B,), out.shape
    assert jnp.allclose(out, ref, atol=1e-4, rtol=1e-4), (out, ref)

    # Case 2: multi-tile batch, not a multiple of the tile (ragged last block,
    # >= 2 "parallel" grid steps for v7x megacore), f32 weights.
    B2 = 1000
    x2 = jax.random.normal(k_x2, (B2, N_DIM), jnp.float32)
    out2 = jax.block_until_ready(predictor_forward(x2, *params))
    ref2 = reference_forward(x2, *params)
    assert out2.shape == (B2,), out2.shape
    assert jnp.allclose(out2, ref2, atol=1e-4, rtol=1e-4)

    # Case 3: bf16 MXU-operand fast path (v6e/v7x); elementwise math stays f32.
    out3 = jax.block_until_ready(
        predictor_forward(x2, *params, use_bf16_matmul=True))
    assert out3.shape == (B2,)
    assert jnp.allclose(out3, ref2, atol=3e-2, rtol=3e-2)

    # Case 4: module-default hidden_size=400 (non-multiple-of-128 feature width).
    params400 = init_params(jax.random.PRNGKey(2), N_DIM, 400)
    out4 = jax.block_until_ready(predictor_forward(x, *params400))
    ref4 = reference_forward(x, *params400)
    assert out4.shape == (B,)
    assert jnp.allclose(out4, ref4, atol=1e-3, rtol=1e-3)

    print("KERNEL_OK")
</pallas_src>

<mosaic_0001>
module attributes {stable_mosaic.version = 11 : i64} {
  func.func @_predictor_kernel(%arg0: i32, %arg1: memref<8x32xf32, #tpu.memory_space<vmem>>, %arg2: memref<32x128xf32, #tpu.memory_space<vmem>>, %arg3: memref<128x128xf32, #tpu.memory_space<vmem>>, %arg4: memref<128x128xf32, #tpu.memory_space<vmem>>, %arg5: memref<4x128xf32, #tpu.memory_space<vmem>>, %arg6: memref<1x8xf32, #tpu.memory_space<vmem>>) attributes {dimension_semantics = [#tpu.dimension_semantics<parallel>], iteration_bounds = array<i64: 1>, scalar_prefetch = 0 : i64, scratch_operands = 0 : i64, tpu.core_type = #tpu.core_type<tc>, window_params = [{transform_indices = @transform_0, window_bounds = array<i64: 8, 32>}, {pipeline_mode = #tpu.pipeline_mode<synchronous>, transform_indices = @transform_1, window_bounds = array<i64: 32, 128>}, {pipeline_mode = #tpu.pipeline_mode<synchronous>, transform_indices = @transform_2, window_bounds = array<i64: 128, 128>}, {pipeline_mode = #tpu.pipeline_mode<synchronous>, transform_indices = @transform_3, window_bounds = array<i64: 128, 128>}, {pipeline_mode = #tpu.pipeline_mode<synchronous>, transform_indices = @transform_4, window_bounds = array<i64: 4, 128>}, {transform_indices = @transform_5, window_bounds = array<i64: 1, 8>}]} {
    %c0 = arith.constant 0 : index
    %c0_0 = arith.constant 0 : index
    %0 = vector.load %arg5[%c0, %c0_0] : memref<4x128xf32, #tpu.memory_space<vmem>>, vector<1x128xf32>
    %c1 = arith.constant 1 : index
    %c0_1 = arith.constant 0 : index
    %1 = vector.load %arg5[%c1, %c0_1] : memref<4x128xf32, #tpu.memory_space<vmem>>, vector<1x128xf32>
    %c2 = arith.constant 2 : index
    %c0_2 = arith.constant 0 : index
    %2 = vector.load %arg5[%c2, %c0_2] : memref<4x128xf32, #tpu.memory_space<vmem>>, vector<1x128xf32>
    %c3 = arith.constant 3 : index
    %c0_3 = arith.constant 0 : index
    %3 = vector.load %arg5[%c3, %c0_3] : memref<4x128xf32, #tpu.memory_space<vmem>>, vector<1x128xf32>
    %c0_4 = arith.constant 0 : index
    %c0_5 = arith.constant 0 : index
    %4 = vector.load %arg1[%c0_4, %c0_5] : memref<8x32xf32, #tpu.memory_space<vmem>>, vector<8x32xf32>
    %c0_6 = arith.constant 0 : index
    %c0_7 = arith.constant 0 : index
    %5 = vector.load %arg2[%c0_6, %c0_7] : memref<32x128xf32, #tpu.memory_space<vmem>>, vector<32x128xf32>
    %cst = arith.constant dense<0.000000e+00> : vector<8x128xf32>
    %6 = tpu.matmul %4, %5, %cst {dimension_numbers = #tpu.dot_dimension_numbers<[1], [0], [0], [1], [0, 0, 1, 1], [], []>} : vector<8x32xf32>, vector<32x128xf32>, vector<8x128xf32> -> vector<8x128xf32>
    %7 = vector.broadcast %0 : vector<1x128xf32> to vector<8x128xf32>
    %8 = arith.addf %6, %7 : vector<8x128xf32>
    %cst_8 = arith.constant 0.000000e+00 : f32
    %9 = vector.broadcast %cst_8 : f32 to vector<8x128xf32>
    %10 = arith.maximumf %8, %9 : vector<8x128xf32>
    %c0_9 = arith.constant 0 : index
    %c0_10 = arith.constant 0 : index
    %11 = vector.load %arg3[%c0_9, %c0_10] : memref<128x128xf32, #tpu.memory_space<vmem>>, vector<128x128xf32>
    %cst_11 = arith.constant dense<0.000000e+00> : vector<8x128xf32>
    %12 = tpu.matmul %10, %11, %cst_11 {dimension_numbers = #tpu.dot_dimension_numbers<[1], [0], [0], [1], [0, 0, 1, 1], [], []>} : vector<8x128xf32>, vector<128x128xf32>, vector<8x128xf32> -> vector<8x128xf32>
    %13 = vector.broadcast %1 : vector<1x128xf32> to vector<8x128xf32>
    %14 = arith.addf %12, %13 : vector<8x128xf32>
    %cst_12 = arith.constant 0.000000e+00 : f32
    %15 = vector.broadcast %cst_12 : f32 to vector<8x128xf32>
    %16 = arith.maximumf %14, %15 : vector<8x128xf32>
    %c0_13 = arith.constant 0 : index
    %c0_14 = arith.constant 0 : index
    %17 = vector.load %arg4[%c0_13, %c0_14] : memref<128x128xf32, #tpu.memory_space<vmem>>, vector<128x128xf32>
    %cst_15 = arith.constant dense<0.000000e+00> : vector<8x128xf32>
    %18 = tpu.matmul %16, %17, %cst_15 {dimension_numbers = #tpu.dot_dimension_numbers<[1], [0], [0], [1], [0, 0, 1, 1], [], []>} : vector<8x128xf32>, vector<128x128xf32>, vector<8x128xf32> -> vector<8x128xf32>
    %19 = vector.broadcast %2 : vector<1x128xf32> to vector<8x128xf32>
    %20 = arith.addf %18, %19 : vector<8x128xf32>
    %cst_16 = arith.constant 0.000000e+00 : f32
    %21 = vector.broadcast %cst_16 : f32 to vector<8x128xf32>
    %22 = arith.maximumf %20, %21 : vector<8x128xf32>
    %cst_17 = arith.constant dense<0.000000e+00> : vector<1x8xf32>
    %23 = tpu.matmul %3, %22, %cst_17 {dimension_numbers = #tpu.dot_dimension_numbers<[1], [1], [0], [0], [0, 0, 1, 0], [], []>} : vector<1x128xf32>, vector<8x128xf32>, vector<1x8xf32> -> vector<1x8xf32>
    %c0_18 = arith.constant 0 : index
    %c0_19 = arith.constant 0 : index
    %24 = vector.load %arg6[%c0_18, %c0_19] : memref<1x8xf32, #tpu.memory_space<vmem>>, vector<1x8xf32>
    tpu.vector_store %arg6[%c0_18, %c0_19], %23 {strides = array<i32>} : memref<1x8xf32, #tpu.memory_space<vmem>>, vector<1x8xf32>,
    return
  }
  func.func @transform_0(%arg0: i32) -> (i32, i32) {
    %c0_i32 = arith.constant 0 : i32
    %c0_i32_0 = arith.constant 0 : i32
    return %arg0, %c0_i32 : i32, i32
  }
  func.func @transform_1(%arg0: i32) -> (i32, i32) {
    %c0_i32 = arith.constant 0 : i32
    %c0_i32_0 = arith.constant 0 : i32
    %c0_i32_1 = arith.constant 0 : i32
    return %c0_i32, %c0_i32_0 : i32, i32
  }
  func.func @transform_2(%arg0: i32) -> (i32, i32) {
    %c0_i32 = arith.constant 0 : i32
    %c0_i32_0 = arith.constant 0 : i32
    %c0_i32_1 = arith.constant 0 : i32
    return %c0_i32, %c0_i32_0 : i32, i32
  }
  func.func @transform_3(%arg0: i32) -> (i32, i32) {
    %c0_i32 = arith.constant 0 : i32
    %c0_i32_0 = arith.constant 0 : i32
    %c0_i32_1 = arith.constant 0 : i32
    return %c0_i32, %c0_i32_0 : i32, i32
  }
  func.func @transform_4(%arg0: i32) -> (i32, i32) {
    %c0_i32 = arith.constant 0 : i32
    %c0_i32_0 = arith.constant 0 : i32
    %c0_i32_1 = arith.constant 0 : i32
    return %c0_i32, %c0_i32_0 : i32, i32
  }
  func.func @transform_5(%arg0: i32) -> (i32, i32) {
    %c0_i32 = arith.constant 0 : i32
    %c0_i32_0 = arith.constant 0 : i32
    return %c0_i32, %arg0 : i32, i32
  }
}

</mosaic_0001>

<llo_original>
// kernel: predictor_forward.1
$region0: #{predictor_forward.1}
  #allocation0 [shape = 'u32[]', space=smem, size = 0x4, offset = 0x4, fixed_abs, tag = 'smem constant byte address 0x4 - core index']
  #allocation1 [shape = 'u32[144,128]{1,0:T(1,128)}', space=vmem, size = 0x12000, scoped, tag = 'internal scratch']
  %s0 = inlined_call_operand.vmem [shape: f32[8,32], index: 0, kind: input, shape index: {}]
  %s1 = inlined_call_operand.hbm [shape: f32[32,128], index: 1, kind: input, shape index: {}]
  %s2 = inlined_call_operand.hbm [shape: f32[128,128], index: 2, kind: input, shape index: {}]
  %s3 = inlined_call_operand.hbm [shape: f32[128,128], index: 3, kind: input, shape index: {}]
  %s4 = inlined_call_operand.vmem [shape: f32[4,128], index: 4, kind: input, shape index: {}]
  %s5 = inlined_call_operand.vmem [shape: f32[1,8], index: 5, kind: output, shape index: {}]
  %s6 = sld [smem:[#allocation0]]
  $region42: #{predictor_forward.1} parent=0
    _
  %s8 = ssub.s32 1, %s6
  %s9 = scalar_select 0, %s8, %s6
  $region1: #{predictor_forward.1} parent=0
    #allocation2 [shape = 'u8[16384]{0}', space=vmem, size = 0x4000, scoped, tag = 'input window, operand 1, single buffered']
    #allocation3 [shape = 's32[1]{0}', space=sflag, size = 0x4, scoped, tag = 'scoped memory for predictor_forward.1']
    #allocation4 [shape = 'u8[65536]{0}', space=vmem, size = 0x10000, scoped, tag = 'input window, operand 2, single buffered']
    #allocation5 [shape = 's32[1]{0}', space=sflag, size = 0x4, scoped, tag = 'scoped memory for predictor_forward.1']
    #allocation6 [shape = 'u8[65536]{0}', space=vmem, size = 0x10000, scoped, tag = 'input window, operand 3, single buffered']
    %10 = vsyncpa [#allocation3], 0
    %11 = vsyncpa [#allocation5], 0
    // Predicated region
    $region2: #{predictor_forward.1} parent=1 // pred_check
      _
    $region3: #{predictor_forward.1} parent=1 // pred_check_branch
      %13 = sbr.rel (0) target = $region5
    $region4: #{predictor_forward.1} parent=1 // pred_region
      _
    $region5: #{predictor_forward.1} parent=1 // pred_fallthru
      _
    // Predicated region
    $region6: #{predictor_forward.1} parent=1 // pred_check
      _
    $region7: #{predictor_forward.1} parent=1 // pred_check_branch
      %15 = sbr.rel (0) target = $region9
    $region8: #{predictor_forward.1} parent=1 // pred_region
      %s17 = ssub.s32 512, 512
      %18 = vsyncadd [#allocation3], %s17
      %s19 = sshll.u32 [#allocation2], 4
      %s20 = int_to_ptr.vmem [resolvable:$true] %s19
      %25 = dma.hbm_to_vmem [thread:$0]  %s1, 512, %s20, [#allocation3], 128, 128, 8
    $region9: #{predictor_forward.1} parent=1 // pred_fallthru
      _
    // Predicated region
    $region10: #{predictor_forward.1} parent=1 // pred_check
      _
    $region11: #{predictor_forward.1} parent=1 // pred_check_branch
      %27 = sbr.rel (0) target = $region13
    $region12: #{predictor_forward.1} parent=1 // pred_region
      %s29 = ssub.s32 2048, 2048
      %30 = vsyncadd [#allocation5], %s29
      %s31 = sshll.u32 [#allocation4], 4
      %s32 = int_to_ptr.vmem [resolvable:$true] %s31
      %37 = dma.hbm_to_vmem [thread:$0]  %s2, 2048, %s32, [#allocation5], 128, 128, 8
    $region13: #{predictor_forward.1} parent=1 // pred_fallthru
      _
    // Predicated region
    $region14: #{predictor_forward.1} parent=1 // pred_check
      _
    $region15: #{predictor_forward.1} parent=1 // pred_check_branch
      %39 = sbr.rel (0) target = $region17
    $region16: #{predictor_forward.1} parent=1 // pred_region
      %s41 = ssub.s32 2048, 2048
      %42 = vsyncadd [#allocation5], %s41
      %s43 = sshll.u32 [#allocation6], 4
      %s44 = int_to_ptr.vmem [resolvable:$true] %s43
      %49 = dma.hbm_to_vmem [thread:$0]  %s3, 2048, %s44, [#allocation5], 128, 128, 8
    $region17: #{predictor_forward.1} parent=1 // pred_fallthru
      _
    // Predicated region
    $region18: #{predictor_forward.1} parent=1 // pred_check
      _
    $region19: #{predictor_forward.1} parent=1 // pred_check_branch
      %51 = sbr.rel (0) target = $region21
    $region20: #{predictor_forward.1} parent=1 // pred_region
      _
    $region21: #{predictor_forward.1} parent=1 // pred_fallthru
      _
    // Predicated region
    $region22: #{predictor_forward.1} parent=1 // pred_check
      _
    $region23: #{predictor_forward.1} parent=1 // pred_check_branch
      %53 = sbr.rel (0) target = $region25
    $region24: #{predictor_forward.1} parent=1 // pred_region
      %54 = dma.done [#allocation3], 512
    $region25: #{predictor_forward.1} parent=1 // pred_fallthru
      _
    // Predicated region
    $region26: #{predictor_forward.1} parent=1 // pred_check
      _
    $region27: #{predictor_forward.1} parent=1 // pred_check_branch
      %56 = sbr.rel (0) target = $region29
    $region28: #{predictor_forward.1} parent=1 // pred_region
      %57 = dma.done [#allocation5], 2048
    $region29: #{predictor_forward.1} parent=1 // pred_fallthru
      _
    // Predicated region
    $region30: #{predictor_forward.1} parent=1 // pred_check
      _
    $region31: #{predictor_forward.1} parent=1 // pred_check_branch
      %59 = sbr.rel (0) target = $region33
    $region32: #{predictor_forward.1} parent=1 // pred_region
      %60 = dma.done [#allocation5], 2048
    $region33: #{predictor_forward.1} parent=1 // pred_fallthru
      _
    %v61 = vld [vmem:[%s4] sm:$0x1]
    %v62 = vld [vmem:[%s4 + $0x1] sm:$0x1]
    %v63 = vld [vmem:[%s4 + $0x2] sm:$0x1]
    %v64 = vld [vmem:[%s4 + $0x3] sm:$0x1]
    %v65 = vld [vmem:[%s0] sm:$0xff]
    %v66 = vld [vmem:[#allocation2] sm:$0xff]
    %v67 = vld [vmem:[#allocation2 + $0x8] sm:$0xff]
    %v68 = vld [vmem:[#allocation2 + $0x10] sm:$0xff]
    %v69 = vld [vmem:[#allocation2 + $0x18] sm:$0xff]
    %v70 = vlaneseq
    %v71 = vshrl.u32 %v70, 7
    %v72 = vsub.s32 0, %v71
    %v73 = vrot.slane %v61, %v72
    %vm74 = vcmask 261120
    %v76 = vsel %vm74, %v65, 0
    %78 = vmatprep.subr.mxu0 0.0
    %79 = vmatpush1.msra.mxu0 %v66
    %80 = vmatprep.subr.mxu0 0.0
    %81 = vmatpush1.msra.mxu0 %v67
    %82 = vmatprep.subr.mxu0 0.0
    %83 = vmatpush1.msra.mxu0 %v68
    %84 = vmatprep.subr.mxu0 0.0
    %85 = vmatpush1.msra.mxu0 %v69
    %86 = vmatprep.subr.mxu0 0.0
    %87 = vmatpush1.msra.mxu0 0.0
    %88 = vmatprep.subr.mxu0 0.0
    %89 = vmatpush1.msra.mxu0 0.0
    %90 = vmatprep.subr.mxu0 0.0
    %91 = vmatpush1.msra.mxu0 0.0
    %92 = vmatprep.subr.mxu0 0.0
    %93 = vmatpush1.msra.mxu0 0.0
    %94 = vmatprep.subr.mxu0 0.0
    %95 = vmatpush1.msra.mxu0 0.0
    %96 = vmatprep.subr.mxu0 0.0
    %97 = vmatpush1.msra.mxu0 0.0
    %98 = vmatprep.subr.mxu0 0.0
    %99 = vmatpush1.msra.mxu0 0.0
    %100 = vmatprep.subr.mxu0 0.0
    %101 = vmatpush1.msra.mxu0 0.0
    %102 = vmatprep.subr.mxu0 0.0
    %103 = vmatpush1.msra.mxu0 0.0
    %104 = vmatprep.subr.mxu0 0.0
    %105 = vmatpush1.msra.mxu0 0.0
    %106 = vmatprep.subr.mxu0 0.0
    %107 = vmatpush1.msra.mxu0 0.0
    %108 = vmatprep.subr.mxu0 0.0
    %109 = vmatpush1.msra.mxu0 0.0
    %110 = vmatprep.subr.mxu0 0.0
    %111 = vmatpush1.msra.mxu0 0.0
    %112 = vmatprep.subr.mxu0 0.0
    %113 = vmatpush1.msra.mxu0 0.0
    %114 = vmatprep.subr.mxu0 0.0
    %115 = vmatpush1.msra.mxu0 0.0
    %116 = vmatprep.subr.mxu0 0.0
    %117 = vmatpush1.msra.mxu0 0.0
    %118 = vmatprep.subr.mxu0 0.0
    %119 = vmatpush1.msra.mxu0 0.0
    %120 = vmatprep.subr.mxu0 0.0
    %121 = vmatpush1.msra.mxu0 0.0
    %122 = vmatprep.subr.mxu0 0.0
    %123 = vmatpush1.msra.mxu0 0.0
    %124 = vmatprep.subr.mxu0 0.0
    %125 = vmatpush1.msra.mxu0 0.0
    %126 = vmatprep.subr.mxu0 0.0
    %127 = vmatpush1.msra.mxu0 0.0
    %128 = vmatprep.subr.mxu0 0.0
    %129 = vmatpush1.msra.mxu0 0.0
    %130 = vmatprep.subr.mxu0 0.0
    %131 = vmatpush1.msra.mxu0 0.0
    %132 = vmatprep.subr.mxu0 0.0
    %133 = vmatpush1.msra.mxu0 0.0
    %134 = vmatprep.subr.mxu0 0.0
    %135 = vmatpush1.msra.mxu0 0.0
    %136 = vmatprep.subr.mxu0 0.0
    %137 = vmatpush1.msra.mxu0 0.0
    %138 = vmatprep.subr.mxu0 0.0
    %139 = vmatpush1.msra.mxu0 0.0
    %140 = vmatprep.subr.mxu0 0.0
    %141 = vmatpush1.msra.mxu0 0.0
    %142 = vmatprep.mubr.f32.mxu0 0.0
    %143 = vmatmul.mubr.f32.gmra.mrb[0].mxu0 %v76
    %v144 = vpop.f32.mrb[0].mxu0
    %v145 = vadd.f32 %v73, %v144
    %v146 = vpop.f32.mrb[0].mxu0
    %147 = vdwg.mxu0
    %v148 = vmax.f32 %v145, 0.0
    %v149 = vld [vmem:[#allocation4] sm:$0xff]
    %v150 = vld [vmem:[#allocation4 + $0x8] sm:$0xff]
    %v151 = vld [vmem:[#allocation4 + $0x10] sm:$0xff]
    %v152 = vld [vmem:[#allocation4 + $0x18] sm:$0xff]
    %v153 = vld [vmem:[#allocation4 + $0x20] sm:$0xff]
    %v154 = vld [vmem:[#allocation4 + $0x28] sm:$0xff]
    %v155 = vld [vmem:[#allocation4 + $0x30] sm:$0xff]
    %v156 = vld [vmem:[#allocation4 + $0x38] sm:$0xff]
    %v157 = vld [vmem:[#allocation4 + $0x40] sm:$0xff]
    %v158 = vld [vmem:[#allocation4 + $0x48] sm:$0xff]
    %v159 = vld [vmem:[#allocation4 + $0x50] sm:$0xff]
    %v160 = vld [vmem:[#allocation4 + $0x58] sm:$0xff]
    %v161 = vld [vmem:[#allocation4 + $0x60] sm:$0xff]
    %v162 = vld [vmem:[#allocation4 + $0x68] sm:$0xff]
    %v163 = vld [vmem:[#allocation4 + $0x70] sm:$0xff]
    %v164 = vld [vmem:[#allocation4 + $0x78] sm:$0xff]
    %v165 = vlaneseq
    %v166 = vshrl.u32 %v165, 7
    %v167 = vsub.s32 0, %v166
    %v168 = vrot.slane %v62, %v167
    %169 = vmatprep.subr.mxu0 0.0
    %170 = vmatpush1.msra.mxu0 %v149
    %171 = vmatprep.subr.mxu0 0.0
    %172 = vmatpush1.msra.mxu0 %v150
    %173 = vmatprep.subr.mxu0 0.0
    %174 = vmatpush1.msra.mxu0 %v151
    %175 = vmatprep.subr.mxu0 0.0
    %176 = vmatpush1.msra.mxu0 %v152
    %177 = vmatprep.subr.mxu0 0.0
    %178 = vmatpush1.msra.mxu0 %v153
    %179 = vmatprep.subr.mxu0 0.0
    %180 = vmatpush1.msra.mxu0 %v154
    %181 = vmatprep.subr.mxu0 0.0
    %182 = vmatpush1.msra.mxu0 %v155
    %183 = vmatprep.subr.mxu0 0.0
    %184 = vmatpush1.msra.mxu0 %v156
    %185 = vmatprep.subr.mxu0 0.0
    %186 = vmatpush1.msra.mxu0 %v157
    %187 = vmatprep.subr.mxu0 0.0
    %188 = vmatpush1.msra.mxu0 %v158
    %189 = vmatprep.subr.mxu0 0.0
    %190 = vmatpush1.msra.mxu0 %v159
    %191 = vmatprep.subr.mxu0 0.0
    %192 = vmatpush1.msra.mxu0 %v160
    %193 = vmatprep.subr.mxu0 0.0
    %194 = vmatpush1.msra.mxu0 %v161
    %195 = vmatprep.subr.mxu0 0.0
    %196 = vmatpush1.msra.mxu0 %v162
    %197 = vmatprep.subr.mxu0 0.0
    %198 = vmatpush1.msra.mxu0 %v163
    %199 = vmatprep.subr.mxu0 0.0
    %200 = vmatpush1.msra.mxu0 %v164
    %201 = vmatprep.subr.mxu0 0.0
    %202 = vmatpush1.msra.mxu0 0.0
    %203 = vmatprep.subr.mxu0 0.0
    %204 = vmatpush1.msra.mxu0 0.0
    %205 = vmatprep.subr.mxu0 0.0
    %206 = vmatpush1.msra.mxu0 0.0
    %207 = vmatprep.subr.mxu0 0.0
    %208 = vmatpush1.msra.mxu0 0.0
    %209 = vmatprep.subr.mxu0 0.0
    %210 = vmatpush1.msra.mxu0 0.0
    %211 = vmatprep.subr.mxu0 0.0
    %212 = vmatpush1.msra.mxu0 0.0
    %213 = vmatprep.subr.mxu0 0.0
    %214 = vmatpush1.msra.mxu0 0.0
    %215 = vmatprep.subr.mxu0 0.0
    %216 = vmatpush1.msra.mxu0 0.0
    %217 = vmatprep.subr.mxu0 0.0
    %218 = vmatpush1.msra.mxu0 0.0
    %219 = vmatprep.subr.mxu0 0.0
    %220 = vmatpush1.msra.mxu0 0.0
    %221 = vmatprep.subr.mxu0 0.0
    %222 = vmatpush1.msra.mxu0 0.0
    %223 = vmatprep.subr.mxu0 0.0
    %224 = vmatpush1.msra.mxu0 0.0
    %225 = vmatprep.subr.mxu0 0.0
    %226 = vmatpush1.msra.mxu0 0.0
    %227 = vmatprep.subr.mxu0 0.0
    %228 = vmatpush1.msra.mxu0 0.0
    %229 = vmatprep.subr.mxu0 0.0
    %230 = vmatpush1.msra.mxu0 0.0
    %231 = vmatprep.subr.mxu0 0.0
    %232 = vmatpush1.msra.mxu0 0.0
    %233 = vmatprep.mubr.f32.mxu0 0.0
    %234 = vmatmul.mubr.f32.gmra.mrb[0].mxu0 %v148
    %v235 = vpop.f32.mrb[0].mxu0
    %v236 = vadd.f32 %v168, %v235
    %v237 = vpop.f32.mrb[0].mxu0
    %238 = vdwg.mxu0
    %v239 = vmax.f32 %v236, 0.0
    %v240 = vld [vmem:[#allocation6] sm:$0xff]
    %v241 = vld [vmem:[#allocation6 + $0x8] sm:$0xff]
    %v242 = vld [vmem:[#allocation6 + $0x10] sm:$0xff]
    %v243 = vld [vmem:[#allocation6 + $0x18] sm:$0xff]
    %v244 = vld [vmem:[#allocation6 + $0x20] sm:$0xff]
    %v245 = vld [vmem:[#allocation6 + $0x28] sm:$0xff]
    %v246 = vld [vmem:[#allocation6 + $0x30] sm:$0xff]
    %v247 = vld [vmem:[#allocation6 + $0x38] sm:$0xff]
    %v248 = vld [vmem:[#allocation6 + $0x40] sm:$0xff]
    %v249 = vld [vmem:[#allocation6 + $0x48] sm:$0xff]
    %v250 = vld [vmem:[#allocation6 + $0x50] sm:$0xff]
    %v251 = vld [vmem:[#allocation6 + $0x58] sm:$0xff]
    %v252 = vld [vmem:[#allocation6 + $0x60] sm:$0xff]
    %v253 = vld [vmem:[#allocation6 + $0x68] sm:$0xff]
    %v254 = vld [vmem:[#allocation6 + $0x70] sm:$0xff]
    %v255 = vld [vmem:[#allocation6 + $0x78] sm:$0xff]
    %v256 = vlaneseq
    %v257 = vshrl.u32 %v256, 7
    %v258 = vsub.s32 0, %v257
    %v259 = vrot.slane %v63, %v258
    %260 = vmatprep.subr.mxu0 0.0
    %261 = vmatpush1.msra.mxu0 %v240
    %262 = vmatprep.subr.mxu0 0.0
    %263 = vmatpush1.msra.mxu0 %v241
    %264 = vmatprep.subr.mxu0 0.0
    %265 = vmatpush1.msra.mxu0 %v242
    %266 = vmatprep.subr.mxu0 0.0
    %267 = vmatpush1.msra.mxu0 %v243
    %268 = vmatprep.subr.mxu0 0.0
    %269 = vmatpush1.msra.mxu0 %v244
    %270 = vmatprep.subr.mxu0 0.0
    %271 = vmatpush1.msra.mxu0 %v245
    %272 = vmatprep.subr.mxu0 0.0
    %273 = vmatpush1.msra.mxu0 %v246
    %274 = vmatprep.subr.mxu0 0.0
    %275 = vmatpush1.msra.mxu0 %v247
    %276 = vmatprep.subr.mxu0 0.0
    %277 = vmatpush1.msra.mxu0 %v248
    %278 = vmatprep.subr.mxu0 0.0
    %279 = vmatpush1.msra.mxu0 %v249
    %280 = vmatprep.subr.mxu0 0.0
    %281 = vmatpush1.msra.mxu0 %v250
    %282 = vmatprep.subr.mxu0 0.0
    %283 = vmatpush1.msra.mxu0 %v251
    %284 = vmatprep.subr.mxu0 0.0
    %285 = vmatpush1.msra.mxu0 %v252
    %286 = vmatprep.subr.mxu0 0.0
    %287 = vmatpush1.msra.mxu0 %v253
    %288 = vmatprep.subr.mxu0 0.0
    %289 = vmatpush1.msra.mxu0 %v254
    %290 = vmatprep.subr.mxu0 0.0
    %291 = vmatpush1.msra.mxu0 %v255
    %292 = vmatprep.subr.mxu0 0.0
    %293 = vmatpush1.msra.mxu0 0.0
    %294 = vmatprep.subr.mxu0 0.0
    %295 = vmatpush1.msra.mxu0 0.0
    %296 = vmatprep.subr.mxu0 0.0
    %297 = vmatpush1.msra.mxu0 0.0
    %298 = vmatprep.subr.mxu0 0.0
    %299 = vmatpush1.msra.mxu0 0.0
    %300 = vmatprep.subr.mxu0 0.0
    %301 = vmatpush1.msra.mxu0 0.0
    %302 = vmatprep.subr.mxu0 0.0
    %303 = vmatpush1.msra.mxu0 0.0
    %304 = vmatprep.subr.mxu0 0.0
    %305 = vmatpush1.msra.mxu0 0.0
    %306 = vmatprep.subr.mxu0 0.0
    %307 = vmatpush1.msra.mxu0 0.0
    %308 = vmatprep.subr.mxu0 0.0
    %309 = vmatpush1.msra.mxu0 0.0
    %310 = vmatprep.subr.mxu0 0.0
    %311 = vmatpush1.msra.mxu0 0.0
    %312 = vmatprep.subr.mxu0 0.0
    %313 = vmatpush1.msra.mxu0 0.0
    %314 = vmatprep.subr.mxu0 0.0
    %315 = vmatpush1.msra.mxu0 0.0
    %316 = vmatprep.subr.mxu0 0.0
    %317 = vmatpush1.msra.mxu0 0.0
    %318 = vmatprep.subr.mxu0 0.0
    %319 = vmatpush1.msra.mxu0 0.0
    %320 = vmatprep.subr.mxu0 0.0
    %321 = vmatpush1.msra.mxu0 0.0
    %322 = vmatprep.subr.mxu0 0.0
    %323 = vmatpush1.msra.mxu0 0.0
    %324 = vmatprep.mubr.f32.mxu0 0.0
    %325 = vmatmul.mubr.f32.gmra.mrb[0].mxu0 %v239
    %v326 = vpop.f32.mrb[0].mxu0
    %v327 = vadd.f32 %v259, %v326
    %v328 = vpop.f32.mrb[0].mxu0
    %329 = vdwg.mxu0
    %v330 = vmax.f32 %v327, 0.0
    %331 = vmatprep.subr.mxu0 0.0
    %332 = vmatpush1.xpose.msra.mxu0 %v330
    %333 = vmatprep.subr.mxu0 0.0
    %334 = vmatpush1.xpose.msra.mxu0 0.0
    %335 = vmatprep.subr.mxu0 0.0
    %336 = vmatpush1.xpose.msra.mxu0 0.0
    %337 = vmatprep.subr.mxu0 0.0
    %338 = vmatpush1.xpose.msra.mxu0 0.0
    %339 = vmatprep.subr.mxu0 0.0
    %340 = vmatpush1.xpose.msra.mxu0 0.0
    %341 = vmatprep.subr.mxu0 0.0
    %342 = vmatpush1.xpose.msra.mxu0 0.0
    %343 = vmatprep.subr.mxu0 0.0
    %344 = vmatpush1.xpose.msra.mxu0 0.0
    %345 = vmatprep.subr.mxu0 0.0
    %346 = vmatpush1.xpose.msra.mxu0 0.0
    %347 = vmatprep.subr.mxu0 0.0
    %348 = vmatpush1.xpose.msra.mxu0 0.0
    %349 = vmatprep.subr.mxu0 0.0
    %350 = vmatpush1.xpose.msra.mxu0 0.0
    %351 = vmatprep.subr.mxu0 0.0
    %352 = vmatpush1.xpose.msra.mxu0 0.0
    %353 = vmatprep.subr.mxu0 0.0
    %354 = vmatpush1.xpose.msra.mxu0 0.0
    %355 = vmatprep.subr.mxu0 0.0
    %356 = vmatpush1.xpose.msra.mxu0 0.0
    %357 = vmatprep.subr.mxu0 0.0
    %358 = vmatpush1.xpose.msra.mxu0 0.0
    %359 = vmatprep.subr.mxu0 0.0
    %360 = vmatpush1.xpose.msra.mxu0 0.0
    %361 = vmatprep.subr.mxu0 0.0
    %362 = vmatpush1.xpose.msra.mxu0 0.0
    %363 = vmatprep.subr.mxu0 0.0
    %364 = vmatpush1.xpose.msra.mxu0 0.0
    %365 = vmatprep.subr.mxu0 0.0
    %366 = vmatpush1.xpose.msra.mxu0 0.0
    %367 = vmatprep.subr.mxu0 0.0
    %368 = vmatpush1.xpose.msra.mxu0 0.0
    %369 = vmatprep.subr.mxu0 0.0
    %370 = vmatpush1.xpose.msra.mxu0 0.0
    %371 = vmatprep.subr.mxu0 0.0
    %372 = vmatpush1.xpose.msra.mxu0 0.0
    %373 = vmatprep.subr.mxu0 0.0
    %374 = vmatpush1.xpose.msra.mxu0 0.0
    %375 = vmatprep.subr.mxu0 0.0
    %376 = vmatpush1.xpose.msra.mxu0 0.0
    %377 = vmatprep.subr.mxu0 0.0
    %378 = vmatpush1.xpose.msra.mxu0 0.0
    %379 = vmatprep.subr.mxu0 0.0
    %380 = vmatpush1.xpose.msra.mxu0 0.0
    %381 = vmatprep.subr.mxu0 0.0
    %382 = vmatpush1.xpose.msra.mxu0 0.0
    %383 = vmatprep.subr.mxu0 0.0
    %384 = vmatpush1.xpose.msra.mxu0 0.0
    %385 = vmatprep.subr.mxu0 0.0
    %386 = vmatpush1.xpose.msra.mxu0 0.0
    %387 = vmatprep.subr.mxu0 0.0
    %388 = vmatpush1.xpose.msra.mxu0 0.0
    %389 = vmatprep.subr.mxu0 0.0
    %390 = vmatpush1.xpose.msra.mxu0 0.0
    %391 = vmatprep.subr.mxu0 0.0
    %392 = vmatpush1.xpose.msra.mxu0 0.0
    %393 = vmatprep.subr.mxu0 0.0
    %394 = vmatpush1.xpose.msra.mxu0 0.0
    %395 = vmatprep.mubr.f32.mxu0 0.0
    %396 = vmatmul.mubr.f32.gmra.mrb[0].mxu0 %v64
    %v397 = vpop.f32.mrb[0].mxu0
    %v398 = vadd.f32 0.0, %v397
    %v399 = vpop.f32.mrb[0].mxu0
    %400 = vdwg.mxu0
    %vm401 = vcmask 57344
    %402 = vst.msk [vmem:[%s5] sm:$0x1] %vm401, %v398
    // Predicated region
    $region34: #{predictor_forward.1} parent=1 // pred_check
      _
    $region35: #{predictor_forward.1} parent=1 // pred_check_branch
      %404 = sbr.rel (0) target = $region37
    $region36: #{predictor_forward.1} parent=1 // pred_region
      _
    $region37: #{predictor_forward.1} parent=1 // pred_fallthru
      _
    // Predicated region
    $region38: #{predictor_forward.1} parent=1 // pred_check
      _
    $region39: #{predictor_forward.1} parent=1 // pred_check_branch
      %406 = sbr.rel (0) target = $region41
    $region40: #{predictor_forward.1} parent=1 // pred_region
      _
    $region41: #{predictor_forward.1} parent=1 // pred_fallthru
      _
    %407 = vsyncpa [#allocation3], 1
    %408 = vsyncpa [#allocation5], 1

</llo_original>
